<compile_context>
chip_gen: v7x
topology: tpu7x:2x2x1
jax: 0.10.0
libtpu: 0.0.40
codegen_flags: <defaults>
</compile_context>

<pallas_src>
import jax
import jax.numpy as jnp
from jax.experimental import pallas as pl
from jax.experimental.pallas import tpu as pltpu

_SUBLANE = 8


def _round_up(x, mult):
    return ((x + mult - 1) // mult) * mult


def _sampler_kernel(sel_ref, z_ref, o_ref, d_ref, out_ref):
    """out[m, 3*s + c] = o[m, c] + d[m, c] * z[s]  (xyz interleaved on lanes).

    sel_ref : (1, TL)  int32   component index c = L % 3 for every output lane
    z_ref   : (1, TL)  float32 depth value z[L // 3] for every output lane
    o_ref   : (TM, 3)  float32 ray origins tile (rays on sublanes)
    d_ref   : (TM, 3)  float32 ray directions tile
    out_ref : (TM, TL) float32, TL = 3 * n_tile
    """
    sel = sel_ref[...]                       # (1, TL)
    z = z_ref[...]                           # (1, TL)
    o = o_ref[...]                           # (TM, 3)
    d = d_ref[...]                           # (TM, 3)

    is_x = sel == 0                          # compare once, reuse for both selects
    is_y = sel == 1
    o_w = jnp.where(is_x, o[:, 0:1], jnp.where(is_y, o[:, 1:2], o[:, 2:3]))
    d_w = jnp.where(is_x, d[:, 0:1], jnp.where(is_y, d[:, 1:2], d[:, 2:3]))
    # Pure VPU broadcast-FMA; MXU intentionally unused (K=3 matmul would waste it).
    out_ref[...] = o_w + d_w * z


def stratified_raysampler(origins, directions, *, n_pts_per_ray, min_depth,
                          max_depth):
    """origins, directions: (M, 3) float32. Returns (sample_points, sample_lengths)."""
    origins = jnp.asarray(origins, jnp.float32)
    directions = jnp.asarray(directions, jnp.float32)
    m = origins.shape[0]
    n = int(n_pts_per_ray)
    step = (max_depth - min_depth) / n_pts_per_ray

    # ---- sample-axis tiling (bounds VMEM for any n_pts) ---------------------
    if n > 2048:
        n_tile = 1024                      # 3*1024 = 3072 lanes (multiple of 128)
    else:
        n_tile = n                         # full lane extent: no padding, no split
    n_pad = _round_up(n, n_tile)
    grid_n = n_pad // n_tile
    tl = 3 * n_tile                        # output lanes per block

    # ---- ray-axis tiling: ~4 MiB output blocks, >=2 parallel steps if possible
    target_block_bytes = 4 * 1024 * 1024
    tm_cap = max(_SUBLANE,
                 (target_block_bytes // (tl * 4)) // _SUBLANE * _SUBLANE)
    grid_m = max(1, (m + tm_cap - 1) // tm_cap)
    if grid_n == 1 and grid_m == 1 and m >= 2 * _SUBLANE:
        grid_m = 2                         # keep both v7x TensorCores busy
    tm = max(_SUBLANE, _round_up((m + grid_m - 1) // grid_m, _SUBLANE))
    m_pad = _round_up(m, tm)
    grid_m = m_pad // tm

    # ---- tiny per-lane tables + (minimally) padded inputs -------------------
    z_vals_pad = min_depth + step * jnp.arange(n_pad, dtype=jnp.float32)   # (n_pad,)
    z_row = jnp.repeat(z_vals_pad, 3)[None, :]                             # (1, 3*n_pad)
    sel_row = jnp.tile(jnp.arange(3, dtype=jnp.int32), n_pad)[None, :]     # (1, 3*n_pad)

    o_in, d_in = origins, directions
    if m_pad != m:
        o_in = jnp.pad(o_in, ((0, m_pad - m), (0, 0)))
        d_in = jnp.pad(d_in, ((0, m_pad - m), (0, 0)))

    out_bytes = 4 * m_pad * 3 * n_pad
    cost = pl.CostEstimate(
        flops=6 * m * n,                   # mul + add per output element
        transcendentals=0,
        bytes_accessed=out_bytes + 4 * (6 * m_pad + 6 * n_pad))

    out_flat = pl.pallas_call(
        _sampler_kernel,
        out_shape=jax.ShapeDtypeStruct((m_pad, 3 * n_pad), jnp.float32),
        grid_spec=pl.GridSpec(
            grid=(grid_m, grid_n),
            in_specs=[
                pl.BlockSpec((1, tl), lambda i, j: (0, j)),    # sel (lane table)
                pl.BlockSpec((1, tl), lambda i, j: (0, j)),    # z   (lane table)
                pl.BlockSpec((tm, 3), lambda i, j: (i, 0)),    # origins
                pl.BlockSpec((tm, 3), lambda i, j: (i, 0)),    # directions
            ],
            out_specs=pl.BlockSpec((tm, tl), lambda i, j: (i, j)),
        ),
        compiler_params=pltpu.CompilerParams(
            dimension_semantics=("parallel", "parallel"),
            vmem_limit_bytes=32 * 1024 * 1024),
        cost_estimate=cost,
    )(sel_row, z_row, o_in, d_in)

    # (M, 3N) row-major -> (M, N, 3) is a pure metadata reshape (no transpose).
    if m_pad == m and n_pad == n:
        sample_points = out_flat.reshape(m, n, 3)
    else:
        sample_points = out_flat[:m, :3 * n].reshape(m, n, 3)

    # sample_lengths is ray-independent: broadcast outside the kernel.
    z_vals = z_vals_pad[:n]
    sample_lengths = jnp.broadcast_to(z_vals, (m, n))[:, :, None]          # (M, N, 1)
    return sample_points, sample_lengths


if __name__ == "__main__":
    # Small config consistent with the module: M rays, N points per ray.
    M = 16
    N_PTS = 64
    MIN_D, MAX_D = 2.0, 6.0

    key = jax.random.PRNGKey(0)
    k_o, k_d = jax.random.split(key)
    origins = jax.random.normal(k_o, (M, 3), dtype=jnp.float32)
    directions = jax.random.normal(k_d, (M, 3), dtype=jnp.float32)

    pts, lens = stratified_raysampler(
        origins, directions,
        n_pts_per_ray=N_PTS, min_depth=MIN_D, max_depth=MAX_D)
    pts, lens = jax.block_until_ready((pts, lens))

    # Pure-JAX reference (mirrors the PyTorch forward exactly).
    step = (MAX_D - MIN_D) / N_PTS
    z_ref = MIN_D + step * jnp.arange(N_PTS, dtype=jnp.float32)
    pts_ref = origins[:, None, :] + jnp.einsum('mi,n->mni', directions, z_ref)
    lens_ref = jnp.tile(z_ref, (M, 1))[:, :, None]

    assert pts.shape == (M, N_PTS, 3) and lens.shape == (M, N_PTS, 1)
    assert jnp.allclose(pts, pts_ref, atol=1e-6)
    assert jnp.allclose(lens, lens_ref, atol=1e-6)
    print("KERNEL_OK")
</pallas_src>

<mosaic_0001>
module attributes {stable_mosaic.version = 11 : i64} {
  func.func @_sampler_kernel(%arg0: i32, %arg1: i32, %arg2: memref<1x192xi32, #tpu.memory_space<vmem>>, %arg3: memref<1x192xf32, #tpu.memory_space<vmem>>, %arg4: memref<8x3xf32, #tpu.memory_space<vmem>>, %arg5: memref<8x3xf32, #tpu.memory_space<vmem>>, %arg6: memref<8x192xf32, #tpu.memory_space<vmem>>) attributes {dimension_semantics = [#tpu.dimension_semantics<parallel>, #tpu.dimension_semantics<parallel>], iteration_bounds = array<i64: 2, 1>, scalar_prefetch = 0 : i64, scratch_operands = 0 : i64, tpu.core_type = #tpu.core_type<tc>, window_params = [{transform_indices = @transform_0, window_bounds = array<i64: 1, 192>}, {transform_indices = @transform_1, window_bounds = array<i64: 1, 192>}, {transform_indices = @transform_2, window_bounds = array<i64: 8, 3>}, {transform_indices = @transform_3, window_bounds = array<i64: 8, 3>}, {transform_indices = @transform_4, window_bounds = array<i64: 8, 192>}]} {
    %c0 = arith.constant 0 : index
    %c0_0 = arith.constant 0 : index
    %0 = vector.load %arg2[%c0, %c0_0] : memref<1x192xi32, #tpu.memory_space<vmem>>, vector<1x192xi32>
    %c0_1 = arith.constant 0 : index
    %c0_2 = arith.constant 0 : index
    %1 = vector.load %arg3[%c0_1, %c0_2] : memref<1x192xf32, #tpu.memory_space<vmem>>, vector<1x192xf32>
    %c0_3 = arith.constant 0 : index
    %c0_4 = arith.constant 0 : index
    %2 = vector.load %arg4[%c0_3, %c0_4] : memref<8x3xf32, #tpu.memory_space<vmem>>, vector<8x3xf32>
    %c0_5 = arith.constant 0 : index
    %c0_6 = arith.constant 0 : index
    %3 = vector.load %arg5[%c0_5, %c0_6] : memref<8x3xf32, #tpu.memory_space<vmem>>, vector<8x3xf32>
    %c0_i32 = arith.constant 0 : i32
    %4 = vector.broadcast %c0_i32 : i32 to vector<1x192xi32>
    %5 = arith.cmpi eq, %0, %4 : vector<1x192xi32>
    %c1_i32 = arith.constant 1 : i32
    %6 = vector.broadcast %c1_i32 : i32 to vector<1x192xi32>
    %7 = arith.cmpi eq, %0, %6 : vector<1x192xi32>
    %8 = vector.extract_strided_slice %2 {offsets = [0, 0], sizes = [8, 1], strides = [1, 1]} : vector<8x3xf32> to vector<8x1xf32>
    %9 = vector.extract_strided_slice %2 {offsets = [0, 1], sizes = [8, 1], strides = [1, 1]} : vector<8x3xf32> to vector<8x1xf32>
    %10 = vector.extract_strided_slice %2 {offsets = [0, 2], sizes = [8, 1], strides = [1, 1]} : vector<8x3xf32> to vector<8x1xf32>
    %11 = vector.shape_cast %7 : vector<1x192xi1> to vector<1x192xi1>
    %12 = vector.broadcast %11 : vector<1x192xi1> to vector<8x192xi1>
    %13 = vector.shape_cast %9 : vector<8x1xf32> to vector<8x1xf32>
    %14 = vector.broadcast %13 : vector<8x1xf32> to vector<8x192xf32>
    %15 = vector.shape_cast %10 : vector<8x1xf32> to vector<8x1xf32>
    %16 = vector.broadcast %15 : vector<8x1xf32> to vector<8x192xf32>
    %17 = arith.select %12, %14, %16 : vector<8x192xi1>, vector<8x192xf32>
    %18 = vector.shape_cast %5 : vector<1x192xi1> to vector<1x192xi1>
    %19 = vector.broadcast %18 : vector<1x192xi1> to vector<8x192xi1>
    %20 = vector.shape_cast %8 : vector<8x1xf32> to vector<8x1xf32>
    %21 = vector.broadcast %20 : vector<8x1xf32> to vector<8x192xf32>
    %22 = arith.select %19, %21, %17 : vector<8x192xi1>, vector<8x192xf32>
    %23 = vector.extract_strided_slice %3 {offsets = [0, 0], sizes = [8, 1], strides = [1, 1]} : vector<8x3xf32> to vector<8x1xf32>
    %24 = vector.extract_strided_slice %3 {offsets = [0, 1], sizes = [8, 1], strides = [1, 1]} : vector<8x3xf32> to vector<8x1xf32>
    %25 = vector.extract_strided_slice %3 {offsets = [0, 2], sizes = [8, 1], strides = [1, 1]} : vector<8x3xf32> to vector<8x1xf32>
    %26 = vector.shape_cast %7 : vector<1x192xi1> to vector<1x192xi1>
    %27 = vector.broadcast %26 : vector<1x192xi1> to vector<8x192xi1>
    %28 = vector.shape_cast %24 : vector<8x1xf32> to vector<8x1xf32>
    %29 = vector.broadcast %28 : vector<8x1xf32> to vector<8x192xf32>
    %30 = vector.shape_cast %25 : vector<8x1xf32> to vector<8x1xf32>
    %31 = vector.broadcast %30 : vector<8x1xf32> to vector<8x192xf32>
    %32 = arith.select %27, %29, %31 : vector<8x192xi1>, vector<8x192xf32>
    %33 = vector.shape_cast %5 : vector<1x192xi1> to vector<1x192xi1>
    %34 = vector.broadcast %33 : vector<1x192xi1> to vector<8x192xi1>
    %35 = vector.shape_cast %23 : vector<8x1xf32> to vector<8x1xf32>
    %36 = vector.broadcast %35 : vector<8x1xf32> to vector<8x192xf32>
    %37 = arith.select %34, %36, %32 : vector<8x192xi1>, vector<8x192xf32>
    %38 = vector.broadcast %1 : vector<1x192xf32> to vector<8x192xf32>
    %39 = arith.mulf %37, %38 : vector<8x192xf32>
    %40 = arith.addf %22, %39 : vector<8x192xf32>
    %c0_7 = arith.constant 0 : index
    %c0_8 = arith.constant 0 : index
    %41 = vector.load %arg6[%c0_7, %c0_8] : memref<8x192xf32, #tpu.memory_space<vmem>>, vector<8x192xf32>
    tpu.vector_store %arg6[%c0_7, %c0_8], %40 {strides = array<i32>} : memref<8x192xf32, #tpu.memory_space<vmem>>, vector<8x192xf32>,
    return
  }
  func.func @transform_0(%arg0: i32, %arg1: i32) -> (i32, i32) {
    %c0_i32 = arith.constant 0 : i32
    %c0_i32_0 = arith.constant 0 : i32
    return %c0_i32, %arg1 : i32, i32
  }
  func.func @transform_1(%arg0: i32, %arg1: i32) -> (i32, i32) {
    %c0_i32 = arith.constant 0 : i32
    %c0_i32_0 = arith.constant 0 : i32
    return %c0_i32, %arg1 : i32, i32
  }
  func.func @transform_2(%arg0: i32, %arg1: i32) -> (i32, i32) {
    %c0_i32 = arith.constant 0 : i32
    %c0_i32_0 = arith.constant 0 : i32
    return %arg0, %c0_i32 : i32, i32
  }
  func.func @transform_3(%arg0: i32, %arg1: i32) -> (i32, i32) {
    %c0_i32 = arith.constant 0 : i32
    %c0_i32_0 = arith.constant 0 : i32
    return %arg0, %c0_i32 : i32, i32
  }
  func.func @transform_4(%arg0: i32, %arg1: i32) -> (i32, i32) {
    %c0_i32 = arith.constant 0 : i32
    return %arg0, %arg1 : i32, i32
  }
}

</mosaic_0001>

<llo_original>
// kernel: tpu_custom_call.1
$region0: #{tpu_custom_call.1}
  #allocation0 [shape = 'u32[]', space=smem, size = 0x4, offset = 0x4, fixed_abs, tag = 'smem constant byte address 0x4 - core index']
  #allocation1 [shape = 'u32[144,128]{1,0:T(1,128)}', space=vmem, size = 0x12000, scoped, tag = 'internal scratch']
  %s0 = inlined_call_operand.vmem [shape: s32[1,192], index: 0, kind: input, shape index: {}]
  %s1 = inlined_call_operand.vmem [shape: f32[1,192], index: 1, kind: input, shape index: {}]
  %s2 = inlined_call_operand.vmem [shape: f32[16,3], index: 2, kind: input, shape index: {}]
  %s3 = inlined_call_operand.vmem [shape: f32[16,3], index: 3, kind: input, shape index: {}]
  %s4 = inlined_call_operand.hbm [shape: f32[16,192], index: 4, kind: output, shape index: {}]
  %s5 = sld [smem:[#allocation0]]
  $region49: #{tpu_custom_call.1} parent=0
    _
  %s7 = ssub.s32 1, %s5
  %s8 = scalar_select 0, %s7, %s5
  $region1: #{tpu_custom_call.1} parent=0
    #allocation2 [shape = 'u8[16384]{0}', space=vmem, size = 0x4000, scoped, tag = 'output window, operand 0']
    #allocation3 [shape = 's32[2]{0}', space=sflag, size = 0x8, scoped, tag = 'scoped memory for tpu_custom_call.1']
    %9 = vsyncpa [#allocation3], 0
    %s10 = scalar_lea.sflag [#allocation3], 1
    %11 = vsyncpa %s10, 0
    loop: start=0, step=1, limit=4
    $region2: #{tpu_custom_call.1} parent=1 // loop_pre_header
      _
    $region3: #{tpu_custom_call.1} parent=1 // loop_header
      %s13 = sphi 0, %s17
      %p14 = scmp.ge.s32.totalorder %s13, 4
      %s20 = sphi 0, %s32
      %s21 = sphi 0, %s28
      %s22 = sphi 0, %s20
      %s23 = sphi 0, %s21
      %s24 = sphi 0, %s22
      %s25 = sphi 0, %s23
      %s35 = sphi 0, %s37
      %s38 = sphi 0, %s35
      %s39 = sphi 0, %s38
      %s55 = sphi 0, %s39
      %s61 = sphi 0, %s63
      %s64 = sphi 0, %s61
      %s65 = sphi 0, %s64
      %s81 = sphi 0, %s65
      %s87 = sphi 0, %s89
      %s90 = sphi 0, %s87
      %s91 = sphi 0, %s90
      %s107 = sphi 0, %s91
      %s113 = sphi 0, %s115
      %s116 = sphi 0, %s113
      %s117 = sphi 0, %s116
      %s133 = sphi 0, %s117
      %s141 = sphi 0, %s143
      %s144 = sphi 0, %s141
      %s145 = sphi 0, %s144
      %s161 = sphi 0, %s145
    $region4: #{tpu_custom_call.1} parent=1 // loop_header_branch
      %16 = sbr.rel (%p14) target = $region8
    $region5: #{tpu_custom_call.1} parent=1 // loop_body
      %s18 = ssub.s32 %s13, 1
      %s19 = ssub.s32 %s13, 2
      %s26 = sadd.s32 1, %s21
      %p27 = scmp.ge.s32.totalorder %s26, 1
      %s28 = scalar_select %p27, 0, %s26
      %s29 = sadd.s32 1, %s20
      %s30 = scalar_select %p27, %s29, %s20
      %p31 = scmp.ge.s32.totalorder %s30, 2
      %s32 = scalar_select %p31, 0, %s30
      %s33 = ssub.s32 %s21, %s28
      %p34 = scmp.eq.s32.totalorder %s33, 0
      %s36 = sadd.s32 %s35, 1
      %s37 = scalar_select %p34, %s35, %s36
      %p40 = pneg %p34
      %p41 = scmp.eq.s32.totalorder %s13, 1
      %p42 = por %p40, %p41
      %p43 = scmp.ne.s32.totalorder %s35, %s38
      %p44 = scmp.eq.s32.totalorder %s13, 0
      %p45 = por %p43, %p44
      %p46 = scmp.ne.s32.totalorder %s35, %s38
      %p47 = scmp.eq.s32.totalorder %s18, 1
      %p48 = por %p46, %p47
      %p49 = scmp.ne.s32.totalorder %s38, %s39
      %p50 = scmp.eq.s32.totalorder %s18, 0
      %p51 = por %p49, %p50
      %p52 = scmp.ne.s32.totalorder %s38, %s39
      %p53 = scmp.eq.s32.totalorder %s19, 1
      %p54 = por %p52, %p53
      %p56 = scmp.ne.s32.totalorder %s39, %s55
      %p57 = scmp.eq.s32.totalorder %s19, 0
      %p58 = por %p56, %p57
      %s59 = ssub.s32 %s21, %s28
      %p60 = scmp.eq.s32.totalorder %s59, 0
      %s62 = sadd.s32 %s61, 1
      %s63 = scalar_select %p60, %s61, %s62
      %p66 = pneg %p60
      %p67 = scmp.eq.s32.totalorder %s13, 1
      %p68 = por %p66, %p67
      %p69 = scmp.ne.s32.totalorder %s61, %s64
      %p70 = scmp.eq.s32.totalorder %s13, 0
      %p71 = por %p69, %p70
      %p72 = scmp.ne.s32.totalorder %s61, %s64
      %p73 = scmp.eq.s32.totalorder %s18, 1
      %p74 = por %p72, %p73
      %p75 = scmp.ne.s32.totalorder %s64, %s65
      %p76 = scmp.eq.s32.totalorder %s18, 0
      %p77 = por %p75, %p76
      %p78 = scmp.ne.s32.totalorder %s64, %s65
      %p79 = scmp.eq.s32.totalorder %s19, 1
      %p80 = por %p78, %p79
      %p82 = scmp.ne.s32.totalorder %s65, %s81
      %p83 = scmp.eq.s32.totalorder %s19, 0
      %p84 = por %p82, %p83
      %s85 = ssub.s32 %s20, %s32
      %p86 = scmp.eq.s32.totalorder %s85, 0
      %s88 = sadd.s32 %s87, 1
      %s89 = scalar_select %p86, %s87, %s88
      %p92 = pneg %p86
      %p93 = scmp.eq.s32.totalorder %s13, 1
      %p94 = por %p92, %p93
      %p95 = scmp.ne.s32.totalorder %s87, %s90
      %p96 = scmp.eq.s32.totalorder %s13, 0
      %p97 = por %p95, %p96
      %p98 = scmp.ne.s32.totalorder %s87, %s90
      %p99 = scmp.eq.s32.totalorder %s18, 1
      %p100 = por %p98, %p99
      %p101 = scmp.ne.s32.totalorder %s90, %s91
      %p102 = scmp.eq.s32.totalorder %s18, 0
      %p103 = por %p101, %p102
      %p104 = scmp.ne.s32.totalorder %s90, %s91
      %p105 = scmp.eq.s32.totalorder %s19, 1
      %p106 = por %p104, %p105
      %p108 = scmp.ne.s32.totalorder %s91, %s107
      %p109 = scmp.eq.s32.totalorder %s19, 0
      %p110 = por %p108, %p109
      %s111 = ssub.s32 %s20, %s32
      %p112 = scmp.eq.s32.totalorder %s111, 0
      %s114 = sadd.s32 %s113, 1
      %s115 = scalar_select %p112, %s113, %s114
      %p118 = pneg %p112
      %p119 = scmp.eq.s32.totalorder %s13, 1
      %p120 = por %p118, %p119
      %p121 = scmp.ne.s32.totalorder %s113, %s116
      %p122 = scmp.eq.s32.totalorder %s13, 0
      %p123 = por %p121, %p122
      %p124 = scmp.ne.s32.totalorder %s113, %s116
      %p125 = scmp.eq.s32.totalorder %s18, 1
      %p126 = por %p124, %p125
      %p127 = scmp.ne.s32.totalorder %s116, %s117
      %p128 = scmp.eq.s32.totalorder %s18, 0
      %p129 = por %p127, %p128
      %p130 = scmp.ne.s32.totalorder %s116, %s117
      %p131 = scmp.eq.s32.totalorder %s19, 1
      %p132 = por %p130, %p131
      %p134 = scmp.ne.s32.totalorder %s117, %s133
      %p135 = scmp.eq.s32.totalorder %s19, 0
      %p136 = por %p134, %p135
      %s137 = ssub.s32 %s20, %s32
      %s138 = ssub.s32 %s21, %s28
      %s139 = sor.u32 %s137, %s138
      %p140 = scmp.eq.s32.totalorder %s139, 0
      %s142 = sadd.s32 %s141, 1
      %s143 = scalar_select %p140, %s141, %s142
      %p146 = pneg %p140
      %p147 = scmp.eq.s32.totalorder %s13, 1
      %p148 = por %p146, %p147
      %p149 = scmp.ne.s32.totalorder %s141, %s144
      %p150 = scmp.eq.s32.totalorder %s13, 0
      %p151 = por %p149, %p150
      %p152 = scmp.ne.s32.totalorder %s141, %s144
      %p153 = scmp.eq.s32.totalorder %s18, 1
      %p154 = por %p152, %p153
      %p155 = scmp.ne.s32.totalorder %s144, %s145
      %p156 = scmp.eq.s32.totalorder %s18, 0
      %p157 = por %p155, %p156
      %p158 = scmp.ne.s32.totalorder %s144, %s145
      %p159 = scmp.eq.s32.totalorder %s19, 1
      %p160 = por %p158, %p159
      %p162 = scmp.ne.s32.totalorder %s145, %s161
      %p163 = scmp.eq.s32.totalorder %s19, 0
      %p164 = por %p162, %p163
      %p165 = scmp.le.s32.totalorder 1, %s13
      %p166 = scmp.lt.s32.totalorder %s13, 3
      %p167 = pnand %p165, %p166
      %p168 = pneg %p167
      // Predicated region
      $region9: #{tpu_custom_call.1} parent=5 // pred_check
        _
      $region10: #{tpu_custom_call.1} parent=5 // pred_check_branch
        %170 = sbr.rel (%p167) target = $region12
      $region11: #{tpu_custom_call.1} parent=5 // pred_region
        %s171 = ssub.s32 %s13, 1
        // Predicated region
        $region13: #{tpu_custom_call.1} parent=11 // pred_check
          %p172 = pneg %p51
        $region14: #{tpu_custom_call.1} parent=11 // pred_check_branch
          %174 = sbr.rel (%p172) target = $region16
        $region15: #{tpu_custom_call.1} parent=11 // pred_region
          %s175 = smul.u32 2, %s23
          %p176 = scmp.lt.s32.totalorder %s175, 1
          %s177 = scalar_select %p176, %s175, 1
          %s178 = scalar_lea.vmem %s0, %s177
          %s179 = smul.u32 2, %s23
        $region16: #{tpu_custom_call.1} parent=11 // pred_fallthru
          _
        // Predicated region
        $region17: #{tpu_custom_call.1} parent=11 // pred_check
          %p180 = pneg %p77
        $region18: #{tpu_custom_call.1} parent=11 // pred_check_branch
          %182 = sbr.rel (%p180) target = $region20
        $region19: #{tpu_custom_call.1} parent=11 // pred_region
          %s183 = smul.u32 2, %s23
          %p184 = scmp.lt.s32.totalorder %s183, 1
          %s185 = scalar_select %p184, %s183, 1
          %s186 = scalar_lea.vmem %s1, %s185
          %s187 = smul.u32 2, %s23
        $region20: #{tpu_custom_call.1} parent=11 // pred_fallthru
          _
      $region12: #{tpu_custom_call.1} parent=5 // pred_fallthru
        _
      %p188 = scmp.lt.s32.totalorder %s13, 2
      // Predicated region
      $region21: #{tpu_custom_call.1} parent=5 // pred_check
        %p189 = pneg %p188
      $region22: #{tpu_custom_call.1} parent=5 // pred_check_branch
        %191 = sbr.rel (%p189) target = $region24
      $region23: #{tpu_custom_call.1} parent=5 // pred_region
        // Predicated region
        $region25: #{tpu_custom_call.1} parent=23 // pred_check
          %p192 = pneg %p97
        $region26: #{tpu_custom_call.1} parent=23 // pred_check_branch
          %194 = sbr.rel (%p192) target = $region28
        $region27: #{tpu_custom_call.1} parent=23 // pred_region
          %p195 = scmp.lt.s32.totalorder %s20, 1
          %s196 = scalar_select %p195, %s20, 1
          %s197 = smul.addr %s196, 8
          %s198 = scalar_lea.vmem %s2, %s197
        $region28: #{tpu_custom_call.1} parent=23 // pred_fallthru
          _
        // Predicated region
        $region29: #{tpu_custom_call.1} parent=23 // pred_check
          %p199 = pneg %p123
        $region30: #{tpu_custom_call.1} parent=23 // pred_check_branch
          %201 = sbr.rel (%p199) target = $region32
        $region31: #{tpu_custom_call.1} parent=23 // pred_region
          %p202 = scmp.lt.s32.totalorder %s20, 1
          %s203 = scalar_select %p202, %s20, 1
          %s204 = smul.addr %s203, 8
          %s205 = scalar_lea.vmem %s3, %s204
        $region32: #{tpu_custom_call.1} parent=23 // pred_fallthru
          _
      $region24: #{tpu_custom_call.1} parent=5 // pred_fallthru
        _
      %p206 = scmp.le.s32.totalorder 1, %s13
      %p207 = scmp.lt.s32.totalorder %s13, 3
      %p208 = pnand %p206, %p207
      %p209 = pneg %p208
      // Predicated region
      $region33: #{tpu_custom_call.1} parent=5 // pred_check
        _
      $region34: #{tpu_custom_call.1} parent=5 // pred_check_branch
        %211 = sbr.rel (%p208) target = $region36
      $region35: #{tpu_custom_call.1} parent=5 // pred_region
        %s212 = ssub.s32 %s13, 1
        %s213 = smul.u32 2, %s23
        %p214 = scmp.lt.s32.totalorder %s213, 1
        %s215 = scalar_select %p214, %s213, 1
        %s216 = scalar_lea.vmem %s0, %s215
        %p217 = pneg %p51
        %p218 = pneg %p48
        %s219 = smul.u32 2, %s23
        %p220 = scmp.lt.s32.totalorder %s219, 1
        %s221 = scalar_select %p220, %s219, 1
        %s222 = scalar_lea.vmem %s1, %s221
        %p223 = pneg %p77
        %p224 = pneg %p74
        %p225 = scmp.lt.s32.totalorder %s22, 1
        %s226 = scalar_select %p225, %s22, 1
        %s227 = smul.addr %s226, 8
        %s228 = scalar_lea.vmem %s2, %s227
        %p229 = pneg %p103
        %p230 = pneg %p100
        %p231 = scmp.lt.s32.totalorder %s22, 1
        %s232 = scalar_select %p231, %s22, 1
        %s233 = smul.addr %s232, 8
        %s234 = scalar_lea.vmem %s3, %s233
        %p235 = pneg %p129
        %p236 = pneg %p126
        %p237 = pneg %p157
        %p238 = pneg %p154
        %s239 = sand.u32 %s144, 1
        %s240 = scalar_lea.sflag [#allocation3], %s239
        %s241 = sand.u32 %s144, 1
        %s242 = smul.addr %s241, 16
        %s243 = scalar_lea.vmem [#allocation2], %s242
        %s244 = smul.u32 2, %s23
        %p245 = scmp.lt.s32.totalorder %s244, 1
        %s246 = scalar_select %p245, %s244, 1
        %s247 = scalar_lea.vmem %s0, %s246
        %s248 = smul.u32 2, %s23
        %s249 = smul.u32 2, %s23
        %p250 = scmp.lt.s32.totalorder %s249, 1
        %s251 = scalar_select %p250, %s249, 1
        %s252 = scalar_lea.vmem %s1, %s251
        %s253 = smul.u32 2, %s23
        %p254 = scmp.lt.s32.totalorder %s22, 1
        %s255 = scalar_select %p254, %s22, 1
        %s256 = smul.addr %s255, 8
        %s257 = scalar_lea.vmem %s2, %s256
        %p258 = scmp.lt.s32.totalorder %s22, 1
        %s259 = scalar_select %p258, %s22, 1
        %s260 = smul.addr %s259, 8
        %s261 = scalar_lea.vmem %s3, %s260
        %s262 = smul.u32 2, %s23
        %v263 = vld [vmem:[%s247] sm:$0x3]
        %v264 = vld [vmem:[%s252] sm:$0x3]
        %v265 = vld [vmem:[%s257] sm:$0xff]
        %v266 = vld [vmem:[%s261] sm:$0xff]
        %vm267 = vcmp.eq.s32.totalorder %v263, 0
        %vm268 = vcmp.eq.s32.totalorder %v263, 1
        %v269 = vsel %vm268, 1, 0
        %v270 = vlaneseq
        %v271 = vshrl.u32 %v270, 7
        %v272 = vsub.s32 0, %v271
        %v273 = vrot.slane %v269, %v272
        %v274 = vlaneseq
        %v275 = vshrl.u32 %v274, 7
        %v276 = vsub.s32 1, %v275
        %v277 = vrot.slane %v269, %v276
        %vm278 = vcmp.eq.s32.totalorder %v273, 1
        %vm279 = vcmp.eq.s32.totalorder %v277, 1
        %281 = vset.pattern.permute.xlu0 1
        %282 = vperm.xlu0 %281, %v265
        %v283 = vpop.permute.xlu0 %282
        %285 = vset.pattern.permute.xlu0 2
        %286 = vperm.xlu0 %285, %v265
        %v287 = vpop.permute.xlu0 %286
        %v289 = vsel %vm278, %v283, %v287
        %v290 = vsel %vm279, %v283, %v287
        %v291 = vsel %vm267, 1, 0
        %v292 = vlaneseq
        %v293 = vshrl.u32 %v292, 7
        %v294 = vsub.s32 0, %v293
        %v295 = vrot.slane %v291, %v294
        %v296 = vlaneseq
        %v297 = vshrl.u32 %v296, 7
        %v298 = vsub.s32 1, %v297
        %v299 = vrot.slane %v291, %v298
        %vm300 = vcmp.eq.s32.totalorder %v295, 1
        %vm301 = vcmp.eq.s32.totalorder %v299, 1
        %302 = vset.pattern.permute.xlu0 0
        %303 = vperm.xlu0 %302, %v265
        %v304 = vpop.permute.xlu0 %303
        %v306 = vsel %vm300, %v304, %v289
        %v307 = vsel %vm301, %v304, %v290
        %309 = vset.pattern.permute.xlu0 1
        %310 = vperm.xlu0 %309, %v266
        %v311 = vpop.permute.xlu0 %310
        %313 = vset.pattern.permute.xlu0 2
        %314 = vperm.xlu0 %313, %v266
        %v315 = vpop.permute.xlu0 %314
        %v317 = vsel %vm278, %v311, %v315
        %v318 = vsel %vm279, %v311, %v315
        %319 = vset.pattern.permute.xlu0 0
        %320 = vperm.xlu0 %319, %v266
        %v321 = vpop.permute.xlu0 %320
        %v323 = vsel %vm300, %v321, %v317
        %v324 = vsel %vm301, %v321, %v318
        %v326 = vlaneseq
        %v327 = vshrl.u32 %v326, 7
        %v328 = vsub.s32 0, %v327
        %v329 = vrot.slane %v264, %v328
        %v330 = vlaneseq
        %v331 = vshrl.u32 %v330, 7
        %v332 = vsub.s32 1, %v331
        %v333 = vrot.slane %v264, %v332
        %v336 = vmul.f32 %v323, %v329
        %v337 = vmul.f32 %v324, %v333
        %v338 = vadd.f32 %v306, %v336
        %v339 = vadd.f32 %v307, %v337
        %340 = vst [vmem:[%s243] sm:$0xff] %v338
        %vm341 = vcmask 523264
        %342 = vst.msk [vmem:[%s243 + $0x8] sm:$0xff] %vm341, %v339
        %s343 = sand.u32 %s144, 1
        %s344 = scalar_lea.sflag [#allocation3], %s343
        %s345 = sand.u32 %s144, 1
        %s346 = smul.addr %s345, 16
        %s347 = scalar_lea.vmem [#allocation2], %s346
        // Predicated region
        $region37: #{tpu_custom_call.1} parent=35 // pred_check
          %p348 = pneg %p154
        $region38: #{tpu_custom_call.1} parent=35 // pred_check_branch
          %350 = sbr.rel (%p348) target = $region40
        $region39: #{tpu_custom_call.1} parent=35 // pred_region
          %s351 = smul.u32 2, %s23
          %s353 = ssub.s32 256, 256
          %354 = vsyncadd %s344, %s353
          %s355 = smul.addr %s22, 2
          %s356 = sadd.s32 %s351, %s355
          %s357 = smul.addr %s356, 128
          %s358 = scalar_lea.hbm %s4, %s357
          %s360 = sshll.u32 %s347, 4
          %s361 = int_to_ptr.vmem [resolvable:$true] %s360
          %363 = dma.vmem_to_hbm [thread:$0]  %s361, 256, %s358, %s344
        $region40: #{tpu_custom_call.1} parent=35 // pred_fallthru
          _
      $region36: #{tpu_custom_call.1} parent=5 // pred_fallthru
        _
      %p364 = scmp.le.s32.totalorder 2, %s13
      // Predicated region
      $region41: #{tpu_custom_call.1} parent=5 // pred_check
        %p365 = pneg %p364
      $region42: #{tpu_custom_call.1} parent=5 // pred_check_branch
        %367 = sbr.rel (%p365) target = $region44
      $region43: #{tpu_custom_call.1} parent=5 // pred_region
        %s368 = ssub.s32 %s13, 2
        // Predicated region
        $region45: #{tpu_custom_call.1} parent=43 // pred_check
          %p369 = pneg %p160
        $region46: #{tpu_custom_call.1} parent=43 // pred_check_branch
          %371 = sbr.rel (%p369) target = $region48
        $region47: #{tpu_custom_call.1} parent=43 // pred_region
          %s372 = sand.u32 %s145, 1
          %s373 = scalar_lea.sflag [#allocation3], %s372
          %s374 = sand.u32 %s145, 1
          %s375 = smul.addr %s374, 16
          %s376 = scalar_lea.vmem [#allocation2], %s375
          %377 = dma.done %s373, 256
        $region48: #{tpu_custom_call.1} parent=43 // pred_fallthru
          _
      $region44: #{tpu_custom_call.1} parent=5 // pred_fallthru
        _
    $region6: #{tpu_custom_call.1} parent=1 // loop_footer
      %s17 = sadd.s32 1, %s13
    $region7: #{tpu_custom_call.1} parent=1 // loop_footer_branch
      %12 = sbr.rel target = $region3
    $region8: #{tpu_custom_call.1} parent=1 // loop_exit
      _
    %378 = vsyncpa [#allocation3], 1
    %s379 = scalar_lea.sflag [#allocation3], 1
    %380 = vsyncpa %s379, 1

</llo_original>
